<compile_context>
chip_gen: v7x
topology: tpu7x:2x2x1
jax: 0.10.0
libtpu: 0.0.40
codegen_flags: <defaults>
</compile_context>

<pallas_src>
import functools

import jax
import jax.numpy as jnp
from jax.experimental import pallas as pl
from jax.experimental.pallas import tpu as pltpu


def _round_up(x, m):
    return (x + m - 1) // m * m


# ---------------------------------------------------------------------------
# Pallas kernel: tiled pairwise squared distances + running per-voxel min,
# with sqrt / scale / clamp / occupancy applied once at the end (O(M) work).
# ---------------------------------------------------------------------------
def _occupancy_kernel(pred_ref, cent_ref, occ_ref, *, resolution):
    # pred_ref: (tn, 3) f32  -- transformed model points (rows = points on sublanes)
    # cent_ref: (3, tm) f32  -- voxel centers, lane-dense (centers on lanes)
    # occ_ref:  (1, tm) f32  -- resident across the N axis; running min(d^2), then occ
    k = pl.program_id(1)

    @pl.when(k == 0)
    def _init():
        occ_ref[...] = jnp.full(occ_ref.shape, jnp.inf, dtype=occ_ref.dtype)

    p = pred_ref[...]                                  # (tn, 3)
    # Squared distances (tn, tm); accumulate in place so at most two (tn, tm)
    # temporaries (d and d2) are live at any time.
    d = p[:, 0:1] - cent_ref[0:1, :]
    d2 = d * d
    d = p[:, 1:2] - cent_ref[1:2, :]
    d2 = d2 + d * d
    d = p[:, 2:3] - cent_ref[2:3, :]
    d2 = d2 + d * d

    tile_min = jnp.min(d2, axis=0, keepdims=True)      # (1, tm) sublane reduce (XLU)
    occ_ref[...] = jnp.minimum(occ_ref[...], tile_min)

    @pl.when(k == pl.num_programs(1) - 1)
    def _finalize():
        # Deferred: sqrt + 1/resolution scale + clamp + occupancy, only O(M) elements.
        half = resolution * 0.5
        min_dist = jnp.sqrt(occ_ref[...]) * (1.0 / resolution)
        clamped = jnp.minimum(min_dist, half)          # clamp(max=resolution/2)
        occ_ref[...] = jnp.maximum(1.0 - clamped * (1.0 / half), 0.0)


def occupancy_pallas(pred, centers, resolution, *, tm=512, tn=1024):
    """pred: (N, 3) transformed model points; centers: (M, 3). Returns occ (M,)."""
    pred = jnp.asarray(pred, jnp.float32)
    centers = jnp.asarray(centers, jnp.float32)
    N = pred.shape[0]
    M = centers.shape[0]

    # Tile sizes: lanes (centers) in multiples of 128, sublanes (points) in
    # multiples of 8.  Defaults keep the per-step working set a few MiB, which
    # fits the scoped-VMEM default on v5e/v6e (128 MiB parts) and v7x (64 MiB).
    tm = min(tm, _round_up(M, 128))
    tn = min(tn, _round_up(N, 8))
    M_pad = _round_up(M, tm)
    N_pad = _round_up(N, tn)

    # Pad model points with far-away sentinels so padded rows never win the min;
    # padded center lanes are simply discarded after the call.
    pred_pad = jnp.full((N_pad, 3), 1e9, dtype=jnp.float32).at[:N].set(pred)
    cent_pad = jnp.zeros((M_pad, 3), dtype=jnp.float32).at[:M].set(centers).T  # (3, M_pad)

    grid = (M_pad // tm, N_pad // tn)
    kernel = functools.partial(_occupancy_kernel, resolution=float(resolution))

    cost = pl.CostEstimate(
        flops=int(9 * M_pad * N_pad),                         # 3 sub + 3 mul + 2 add + min
        transcendentals=int(M_pad),                           # deferred sqrt, O(M)
        bytes_accessed=int(4 * (3 * N_pad * grid[0] + 3 * M_pad + M_pad)),
    )

    occ = pl.pallas_call(
        kernel,
        out_shape=jax.ShapeDtypeStruct((1, M_pad), jnp.float32),
        grid_spec=pltpu.PrefetchScalarGridSpec(
            num_scalar_prefetch=0,
            grid=grid,
            in_specs=[
                pl.BlockSpec((tn, 3), lambda i, k: (k, 0)),    # model points (N tiles)
                pl.BlockSpec((3, tm), lambda i, k: (0, i)),    # centers, lane-dense
            ],
            out_specs=pl.BlockSpec((1, tm), lambda i, k: (0, i)),  # lane-dense, resident over k
        ),
        compiler_params=pltpu.CompilerParams(
            dimension_semantics=("parallel", "arbitrary"),     # M parallel (megacore), N reduce
            vmem_limit_bytes=32 * 1024 * 1024,
        ),
        cost_estimate=cost,
    )(pred_pad, cent_pad)
    return occ[0, :M]


# ---------------------------------------------------------------------------
# Glue (parameter setup, 4x4 quaternion matrix, hoisted transform, tiny epilogue)
# ---------------------------------------------------------------------------
class Voxels:
    def __init__(self, num_voxels, resolution):
        self.voxels = list(range(num_voxels))
        self.resolution = float(resolution)


class ICC:
    def __init__(self, quat, tran, model):
        self.quat = jnp.asarray(quat, jnp.float32)
        self.tran = jnp.asarray(tran, jnp.float32)
        m = jnp.asarray(model, jnp.float32)                          # (N, 3)
        self.model = jnp.concatenate(
            [m, jnp.ones((m.shape[0], 1), jnp.float32)], axis=1).T   # (4, N) homogeneous cols
        # xmap / ymap / ones of the original module are unused in forward.

    def quaternion_matrix(self, quat, tran):
        q = quat.reshape(-1)
        norm = jnp.sum(q * q)
        q = q * jnp.sqrt(2.0 / norm)
        Q = jnp.outer(q, q)                                          # 4x4 (== outer())
        R = jnp.eye(4, dtype=jnp.float32)
        R = R.at[0, 0].set(1.0 - Q[2, 2] - Q[3, 3])
        R = R.at[0, 1].set(Q[1, 2] - Q[3, 0])
        R = R.at[0, 2].set(Q[1, 3] + Q[2, 0])
        R = R.at[1, 0].set(Q[1, 2] + Q[3, 0])
        R = R.at[1, 1].set(1.0 - Q[1, 1] - Q[3, 3])
        R = R.at[1, 2].set(Q[2, 3] - Q[1, 0])
        R = R.at[2, 0].set(Q[1, 3] - Q[2, 0])
        R = R.at[2, 1].set(Q[2, 3] + Q[1, 0])
        R = R.at[2, 2].set(1.0 - Q[1, 1] - Q[2, 2])
        R = R.at[0, 3].set(tran[0])
        R = R.at[1, 3].set(tran[1])
        R = R.at[2, 3].set(tran[2])
        return R

    def forward(self, mask, depth, voxels, view_matrix, proj_matrix, ivip,
                centers, free, occupied_by_other, masks):
        del mask, depth, proj_matrix, ivip  # unused (as in the PyTorch forward)
        mat_eye = self.quaternion_matrix(self.quat, self.tran)
        view = jnp.asarray(view_matrix, jnp.float32)
        mat_world = jnp.matmul(jnp.linalg.inv(view), mat_eye)

        # Hoisted O(N) transform + perspective divide (exact f32).
        pred_h = jnp.matmul(mat_world, self.model,
                            precision=jax.lax.Precision.HIGHEST)     # (4, N)
        pred = (pred_h / pred_h[3:4, :])[:3, :].T                    # (N, 3)

        # Hot O(M*N) path: per-voxel occupancy (Pallas kernel).
        occ = occupancy_pallas(pred, centers, voxels.resolution)

        pred_sum = jnp.sum(occ)
        mask_sum = jnp.sum(masks)
        term_pos = jnp.where(pred_sum > 0,
                             jnp.sum((free + occupied_by_other) * occ) / pred_sum, 0.0)
        term_neg = jnp.where(mask_sum > 0,
                             jnp.sum(masks * occ) / mask_sum, 0.0)
        return term_pos - term_neg


# ---------------------------------------------------------------------------
# Pure-JAX reference (mirrors the PyTorch math) for a sanity check.
# ---------------------------------------------------------------------------
def reference_occupancy(icc, view_matrix, centers, resolution):
    mat_eye = icc.quaternion_matrix(icc.quat, icc.tran)
    mat_world = jnp.matmul(jnp.linalg.inv(view_matrix), mat_eye)
    pred_h = jnp.matmul(mat_world, icc.model,
                        precision=jax.lax.Precision.HIGHEST)         # (4, N)
    pred = (pred_h / pred_h[3:4, :])[:3, :].T                        # (N, 3)
    diff = pred[None, :, :] - centers[:, None, :]                    # (M, N, 3)
    dist = jnp.linalg.norm(diff / resolution, axis=2)                # (M, N)
    mind = jnp.min(dist, axis=1)
    half = resolution / 2.0
    occ = jnp.maximum(1.0 - jnp.minimum(mind, half) / half, 0.0)
    return occ


if __name__ == "__main__":
    key = jax.random.PRNGKey(0)
    ks = jax.random.split(key, 8)

    N, M = 64, 16                 # model points, voxel centers
    resolution = 0.5

    quat = jax.random.normal(ks[0], (4,), jnp.float32)
    tran = 0.1 * jax.random.normal(ks[1], (3,), jnp.float32)
    model = jax.random.uniform(ks[2], (N, 3), jnp.float32, minval=-0.5, maxval=0.5)
    icc = ICC(quat, tran, model)

    view_matrix = (jnp.eye(4, dtype=jnp.float32)
                   + 0.05 * jax.random.normal(ks[3], (4, 4), jnp.float32))
    centers = jax.random.uniform(ks[4], (M, 3), jnp.float32, minval=-1.0, maxval=1.0)
    free = jax.random.uniform(ks[5], (M,), jnp.float32)
    occupied_by_other = jax.random.uniform(ks[6], (M,), jnp.float32)
    masks = (jax.random.uniform(ks[7], (M,)) > 0.5).astype(jnp.float32)

    voxels = Voxels(M, resolution)
    mask_unused = jnp.zeros((8, 8), jnp.float32)
    depth_unused = jnp.zeros((8, 8, 3), jnp.float32)
    proj_unused = jnp.eye(4, dtype=jnp.float32)
    ivip_unused = None

    loss = icc.forward(mask_unused, depth_unused, voxels, view_matrix, proj_unused,
                       ivip_unused, centers, free, occupied_by_other, masks)
    loss = jax.block_until_ready(loss)

    # sanity check vs pure-JAX reference
    mat_eye = icc.quaternion_matrix(icc.quat, icc.tran)
    mat_world = jnp.matmul(jnp.linalg.inv(view_matrix), mat_eye)
    pred_h = jnp.matmul(mat_world, icc.model, precision=jax.lax.Precision.HIGHEST)
    pred = (pred_h / pred_h[3:4, :])[:3, :].T
    occ_kernel = occupancy_pallas(pred, centers, resolution)
    occ_ref = reference_occupancy(icc, view_matrix, centers, resolution)
    occ_kernel, occ_ref = jax.block_until_ready((occ_kernel, occ_ref))
    assert bool(jnp.all(jnp.isfinite(loss)))
    assert bool(jnp.allclose(occ_kernel, occ_ref, atol=1e-3, rtol=1e-3))

    print("KERNEL_OK")
</pallas_src>

<mosaic_0001>
module attributes {stable_mosaic.version = 11 : i64} {
  func.func @_occupancy_kernel(%arg0: i32, %arg1: i32, %arg2: memref<64x3xf32, #tpu.memory_space<vmem>>, %arg3: memref<3x128xf32, #tpu.memory_space<vmem>>, %arg4: memref<1x128xf32, #tpu.memory_space<vmem>>) attributes {dimension_semantics = [#tpu.dimension_semantics<parallel>, #tpu.dimension_semantics<arbitrary>], iteration_bounds = array<i64: 1, 1>, scalar_prefetch = 0 : i64, scratch_operands = 0 : i64, tpu.core_type = #tpu.core_type<tc>, window_params = [{transform_indices = @transform_0, window_bounds = array<i64: 64, 3>}, {transform_indices = @transform_1, window_bounds = array<i64: 3, 128>}, {transform_indices = @transform_2, window_bounds = array<i64: 1, 128>}]} {
    %c0_i32 = arith.constant 0 : i32
    %0 = arith.cmpi eq, %arg1, %c0_i32 : i32
    %1 = arith.extui %0 : i1 to i32
    %c0_i32_0 = arith.constant 0 : i32
    %2 = arith.cmpi ne, %1, %c0_i32_0 : i32
    scf.if %2 {
      %cst_12 = arith.constant 0x7F800000 : f32
      %32 = vector.broadcast %cst_12 : f32 to vector<1x128xf32>
      %c0_13 = arith.constant 0 : index
      %c0_14 = arith.constant 0 : index
      %33 = vector.load %arg4[%c0_13, %c0_14] : memref<1x128xf32, #tpu.memory_space<vmem>>, vector<1x128xf32>
      tpu.vector_store %arg4[%c0_13, %c0_14], %32 {strides = array<i32>} : memref<1x128xf32, #tpu.memory_space<vmem>>, vector<1x128xf32>,
    } else {
    }
    %c0 = arith.constant 0 : index
    %c0_1 = arith.constant 0 : index
    %3 = vector.load %arg2[%c0, %c0_1] : memref<64x3xf32, #tpu.memory_space<vmem>>, vector<64x3xf32>
    %4 = vector.extract_strided_slice %3 {offsets = [0, 0], sizes = [64, 1], strides = [1, 1]} : vector<64x3xf32> to vector<64x1xf32>
    %c0_2 = arith.constant 0 : index
    %c0_3 = arith.constant 0 : index
    %5 = vector.load %arg3[%c0_2, %c0_3] : memref<3x128xf32, #tpu.memory_space<vmem>>, vector<1x128xf32>
    %6 = vector.broadcast %4 : vector<64x1xf32> to vector<64x128xf32>
    %7 = vector.broadcast %5 : vector<1x128xf32> to vector<64x128xf32>
    %8 = arith.subf %6, %7 : vector<64x128xf32>
    %9 = arith.mulf %8, %8 : vector<64x128xf32>
    %10 = vector.extract_strided_slice %3 {offsets = [0, 1], sizes = [64, 1], strides = [1, 1]} : vector<64x3xf32> to vector<64x1xf32>
    %c1 = arith.constant 1 : index
    %c0_4 = arith.constant 0 : index
    %11 = vector.load %arg3[%c1, %c0_4] : memref<3x128xf32, #tpu.memory_space<vmem>>, vector<1x128xf32>
    %12 = vector.broadcast %10 : vector<64x1xf32> to vector<64x128xf32>
    %13 = vector.broadcast %11 : vector<1x128xf32> to vector<64x128xf32>
    %14 = arith.subf %12, %13 : vector<64x128xf32>
    %15 = arith.mulf %14, %14 : vector<64x128xf32>
    %16 = arith.addf %9, %15 : vector<64x128xf32>
    %17 = vector.extract_strided_slice %3 {offsets = [0, 2], sizes = [64, 1], strides = [1, 1]} : vector<64x3xf32> to vector<64x1xf32>
    %c2 = arith.constant 2 : index
    %c0_5 = arith.constant 0 : index
    %18 = vector.load %arg3[%c2, %c0_5] : memref<3x128xf32, #tpu.memory_space<vmem>>, vector<1x128xf32>
    %19 = vector.broadcast %17 : vector<64x1xf32> to vector<64x128xf32>
    %20 = vector.broadcast %18 : vector<1x128xf32> to vector<64x128xf32>
    %21 = arith.subf %19, %20 : vector<64x128xf32>
    %22 = arith.mulf %21, %21 : vector<64x128xf32>
    %23 = arith.addf %16, %22 : vector<64x128xf32>
    %cst = arith.constant dense<0x7F800000> : vector<128xf32>
    %24 = vector.multi_reduction <minimumf>, %23, %cst [0] : vector<64x128xf32> to vector<128xf32>
    %25 = vector.shape_cast %24 : vector<128xf32> to vector<1x128xf32>
    %c0_6 = arith.constant 0 : index
    %c0_7 = arith.constant 0 : index
    %26 = vector.load %arg4[%c0_6, %c0_7] : memref<1x128xf32, #tpu.memory_space<vmem>>, vector<1x128xf32>
    %27 = arith.minimumf %26, %25 : vector<1x128xf32>
    %c0_8 = arith.constant 0 : index
    %c0_9 = arith.constant 0 : index
    %28 = vector.load %arg4[%c0_8, %c0_9] : memref<1x128xf32, #tpu.memory_space<vmem>>, vector<1x128xf32>
    tpu.vector_store %arg4[%c0_8, %c0_9], %27 {strides = array<i32>} : memref<1x128xf32, #tpu.memory_space<vmem>>, vector<1x128xf32>,
    %c0_i32_10 = arith.constant 0 : i32
    %29 = arith.cmpi eq, %arg1, %c0_i32_10 : i32
    %30 = arith.extui %29 : i1 to i32
    %c0_i32_11 = arith.constant 0 : i32
    %31 = arith.cmpi ne, %30, %c0_i32_11 : i32
    scf.if %31 {
      %c0_12 = arith.constant 0 : index
      %c0_13 = arith.constant 0 : index
      %32 = vector.load %arg4[%c0_12, %c0_13] : memref<1x128xf32, #tpu.memory_space<vmem>>, vector<1x128xf32>
      %33 = math.sqrt %32 : vector<1x128xf32>
      %cst_14 = arith.constant 2.000000e+00 : f32
      %34 = vector.broadcast %cst_14 : f32 to vector<1x128xf32>
      %35 = arith.mulf %33, %34 : vector<1x128xf32>
      %cst_15 = arith.constant 2.500000e-01 : f32
      %36 = vector.broadcast %cst_15 : f32 to vector<1x128xf32>
      %37 = arith.minimumf %35, %36 : vector<1x128xf32>
      %cst_16 = arith.constant 4.000000e+00 : f32
      %38 = vector.broadcast %cst_16 : f32 to vector<1x128xf32>
      %39 = arith.mulf %37, %38 : vector<1x128xf32>
      %cst_17 = arith.constant 1.000000e+00 : f32
      %40 = vector.broadcast %cst_17 : f32 to vector<1x128xf32>
      %41 = arith.subf %40, %39 : vector<1x128xf32>
      %cst_18 = arith.constant 0.000000e+00 : f32
      %42 = vector.broadcast %cst_18 : f32 to vector<1x128xf32>
      %43 = arith.maximumf %41, %42 : vector<1x128xf32>
      %c0_19 = arith.constant 0 : index
      %c0_20 = arith.constant 0 : index
      %44 = vector.load %arg4[%c0_19, %c0_20] : memref<1x128xf32, #tpu.memory_space<vmem>>, vector<1x128xf32>
      tpu.vector_store %arg4[%c0_19, %c0_20], %43 {strides = array<i32>} : memref<1x128xf32, #tpu.memory_space<vmem>>, vector<1x128xf32>,
    } else {
    }
    return
  }
  func.func @transform_0(%arg0: i32, %arg1: i32) -> (i32, i32) {
    %c0_i32 = arith.constant 0 : i32
    %c0_i32_0 = arith.constant 0 : i32
    return %arg1, %c0_i32 : i32, i32
  }
  func.func @transform_1(%arg0: i32, %arg1: i32) -> (i32, i32) {
    %c0_i32 = arith.constant 0 : i32
    %c0_i32_0 = arith.constant 0 : i32
    return %c0_i32, %arg0 : i32, i32
  }
  func.func @transform_2(%arg0: i32, %arg1: i32) -> (i32, i32) {
    %c0_i32 = arith.constant 0 : i32
    %c0_i32_0 = arith.constant 0 : i32
    return %c0_i32, %arg0 : i32, i32
  }
}

</mosaic_0001>

<llo_original>
// kernel: tpu_custom_call.1
$region0: #{tpu_custom_call.1}
  #allocation0 [shape = 'u32[]', space=smem, size = 0x4, offset = 0x4, fixed_abs, tag = 'smem constant byte address 0x4 - core index']
  #allocation1 [shape = 'u32[144,128]{1,0:T(1,128)}', space=vmem, size = 0x12000, scoped, tag = 'internal scratch']
  %s0 = inlined_call_operand.vmem [shape: f32[64,3], index: 0, kind: input, shape index: {}]
  %s1 = inlined_call_operand.vmem [shape: f32[3,128], index: 1, kind: input, shape index: {}]
  %s2 = inlined_call_operand.hbm [shape: f32[1,128], index: 2, kind: output, shape index: {}]
  %s3 = sld [smem:[#allocation0]]
  $region26: #{tpu_custom_call.1} parent=0
    _
  %s5 = ssub.s32 1, %s3
  %s6 = scalar_select 0, %s5, %s3
  $region1: #{tpu_custom_call.1} parent=0
    #allocation2 [shape = 'u8[512]{0}', space=vmem, size = 0x400, scoped, tag = 'output window, operand 0, single buffered']
    #allocation3 [shape = 's32[1]{0}', space=sflag, size = 0x4, scoped, tag = 'scoped memory for tpu_custom_call.1']
    %7 = vsyncpa [#allocation3], 0
    // Predicated region
    $region2: #{tpu_custom_call.1} parent=1 // pred_check
      _
    $region3: #{tpu_custom_call.1} parent=1 // pred_check_branch
      %9 = sbr.rel (0) target = $region5
    $region4: #{tpu_custom_call.1} parent=1 // pred_region
      _
    $region5: #{tpu_custom_call.1} parent=1 // pred_fallthru
      _
    // Predicated region
    $region6: #{tpu_custom_call.1} parent=1 // pred_check
      _
    $region7: #{tpu_custom_call.1} parent=1 // pred_check_branch
      %11 = sbr.rel (0) target = $region9
    $region8: #{tpu_custom_call.1} parent=1 // pred_region
      _
    $region9: #{tpu_custom_call.1} parent=1 // pred_fallthru
      _
    %p12 = scmp.eq.s32.totalorder 0, 0
    // Predicated region
    $region10: #{tpu_custom_call.1} parent=1 // pred_check
      %p13 = pneg %p12
    $region11: #{tpu_custom_call.1} parent=1 // pred_check_branch
      %15 = sbr.rel (%p13) target = $region13
    $region12: #{tpu_custom_call.1} parent=1 // pred_region
      %16 = vst [vmem:[#allocation2] sm:$0x1] inf
    $region13: #{tpu_custom_call.1} parent=1 // pred_fallthru
      _
    %v17 = vld [vmem:[%s0] sm:$0xff]
    %v18 = vld [vmem:[%s0 + $0x8] sm:$0xff]
    %v19 = vld [vmem:[%s0 + $0x10] sm:$0xff]
    %v20 = vld [vmem:[%s0 + $0x18] sm:$0xff]
    %v21 = vld [vmem:[%s0 + $0x20] sm:$0xff]
    %v22 = vld [vmem:[%s0 + $0x28] sm:$0xff]
    %v23 = vld [vmem:[%s0 + $0x30] sm:$0xff]
    %v24 = vld [vmem:[%s0 + $0x38] sm:$0xff]
    %v25 = vld [vmem:[%s1] sm:$0x1]
    %27 = vset.pattern.permute.xlu0 0
    %28 = vperm.xlu0 %27, %v17
    %v29 = vpop.permute.xlu0 %28
    %32 = vset.pattern.permute.xlu0 0
    %33 = vperm.xlu0 %32, %v18
    %v34 = vpop.permute.xlu0 %33
    %37 = vset.pattern.permute.xlu0 0
    %38 = vperm.xlu0 %37, %v19
    %v39 = vpop.permute.xlu0 %38
    %42 = vset.pattern.permute.xlu0 0
    %43 = vperm.xlu0 %42, %v20
    %v44 = vpop.permute.xlu0 %43
    %47 = vset.pattern.permute.xlu0 0
    %48 = vperm.xlu0 %47, %v21
    %v49 = vpop.permute.xlu0 %48
    %52 = vset.pattern.permute.xlu0 0
    %53 = vperm.xlu0 %52, %v22
    %v54 = vpop.permute.xlu0 %53
    %57 = vset.pattern.permute.xlu0 0
    %58 = vperm.xlu0 %57, %v23
    %v59 = vpop.permute.xlu0 %58
    %62 = vset.pattern.permute.xlu0 0
    %63 = vperm.xlu0 %62, %v24
    %v64 = vpop.permute.xlu0 %63
    %v66 = vlaneseq
    %v67 = vshrl.u32 %v66, 7
    %v68 = vsub.s32 0, %v67
    %v69 = vrot.slane %v25, %v68
    %v70 = vsub.f32 %v29, %v69
    %v71 = vsub.f32 %v34, %v69
    %v72 = vsub.f32 %v39, %v69
    %v73 = vsub.f32 %v44, %v69
    %v74 = vsub.f32 %v49, %v69
    %v75 = vsub.f32 %v54, %v69
    %v76 = vsub.f32 %v59, %v69
    %v77 = vsub.f32 %v64, %v69
    %v78 = vmul.f32 %v70, %v70
    %v79 = vmul.f32 %v71, %v71
    %v80 = vmul.f32 %v72, %v72
    %v81 = vmul.f32 %v73, %v73
    %v82 = vmul.f32 %v74, %v74
    %v83 = vmul.f32 %v75, %v75
    %v84 = vmul.f32 %v76, %v76
    %v85 = vmul.f32 %v77, %v77
    %v86 = vld [vmem:[%s1 + $0x1] sm:$0x1]
    %87 = vset.pattern.permute.xlu0 1
    %88 = vperm.xlu0 %87, %v17
    %v89 = vpop.permute.xlu0 %88
    %91 = vset.pattern.permute.xlu0 1
    %92 = vperm.xlu0 %91, %v18
    %v93 = vpop.permute.xlu0 %92
    %95 = vset.pattern.permute.xlu0 1
    %96 = vperm.xlu0 %95, %v19
    %v97 = vpop.permute.xlu0 %96
    %99 = vset.pattern.permute.xlu0 1
    %100 = vperm.xlu0 %99, %v20
    %v101 = vpop.permute.xlu0 %100
    %103 = vset.pattern.permute.xlu0 1
    %104 = vperm.xlu0 %103, %v21
    %v105 = vpop.permute.xlu0 %104
    %107 = vset.pattern.permute.xlu0 1
    %108 = vperm.xlu0 %107, %v22
    %v109 = vpop.permute.xlu0 %108
    %111 = vset.pattern.permute.xlu0 1
    %112 = vperm.xlu0 %111, %v23
    %v113 = vpop.permute.xlu0 %112
    %115 = vset.pattern.permute.xlu0 1
    %116 = vperm.xlu0 %115, %v24
    %v117 = vpop.permute.xlu0 %116
    %v119 = vlaneseq
    %v120 = vshrl.u32 %v119, 7
    %v121 = vsub.s32 0, %v120
    %v122 = vrot.slane %v86, %v121
    %v123 = vsub.f32 %v89, %v122
    %v124 = vsub.f32 %v93, %v122
    %v125 = vsub.f32 %v97, %v122
    %v126 = vsub.f32 %v101, %v122
    %v127 = vsub.f32 %v105, %v122
    %v128 = vsub.f32 %v109, %v122
    %v129 = vsub.f32 %v113, %v122
    %v130 = vsub.f32 %v117, %v122
    %v131 = vmul.f32 %v123, %v123
    %v132 = vmul.f32 %v124, %v124
    %v133 = vmul.f32 %v125, %v125
    %v134 = vmul.f32 %v126, %v126
    %v135 = vmul.f32 %v127, %v127
    %v136 = vmul.f32 %v128, %v128
    %v137 = vmul.f32 %v129, %v129
    %v138 = vmul.f32 %v130, %v130
    %v139 = vadd.f32 %v78, %v131
    %v140 = vadd.f32 %v79, %v132
    %v141 = vadd.f32 %v80, %v133
    %v142 = vadd.f32 %v81, %v134
    %v143 = vadd.f32 %v82, %v135
    %v144 = vadd.f32 %v83, %v136
    %v145 = vadd.f32 %v84, %v137
    %v146 = vadd.f32 %v85, %v138
    %v147 = vld [vmem:[%s1 + $0x2] sm:$0x1]
    %148 = vset.pattern.permute.xlu0 2
    %149 = vperm.xlu0 %148, %v17
    %v150 = vpop.permute.xlu0 %149
    %152 = vset.pattern.permute.xlu0 2
    %153 = vperm.xlu0 %152, %v18
    %v154 = vpop.permute.xlu0 %153
    %156 = vset.pattern.permute.xlu0 2
    %157 = vperm.xlu0 %156, %v19
    %v158 = vpop.permute.xlu0 %157
    %160 = vset.pattern.permute.xlu0 2
    %161 = vperm.xlu0 %160, %v20
    %v162 = vpop.permute.xlu0 %161
    %164 = vset.pattern.permute.xlu0 2
    %165 = vperm.xlu0 %164, %v21
    %v166 = vpop.permute.xlu0 %165
    %168 = vset.pattern.permute.xlu0 2
    %169 = vperm.xlu0 %168, %v22
    %v170 = vpop.permute.xlu0 %169
    %172 = vset.pattern.permute.xlu0 2
    %173 = vperm.xlu0 %172, %v23
    %v174 = vpop.permute.xlu0 %173
    %176 = vset.pattern.permute.xlu0 2
    %177 = vperm.xlu0 %176, %v24
    %v178 = vpop.permute.xlu0 %177
    %v180 = vlaneseq
    %v181 = vshrl.u32 %v180, 7
    %v182 = vsub.s32 0, %v181
    %v183 = vrot.slane %v147, %v182
    %v184 = vsub.f32 %v150, %v183
    %v185 = vsub.f32 %v154, %v183
    %v186 = vsub.f32 %v158, %v183
    %v187 = vsub.f32 %v162, %v183
    %v188 = vsub.f32 %v166, %v183
    %v189 = vsub.f32 %v170, %v183
    %v190 = vsub.f32 %v174, %v183
    %v191 = vsub.f32 %v178, %v183
    %v192 = vmul.f32 %v184, %v184
    %v193 = vmul.f32 %v185, %v185
    %v194 = vmul.f32 %v186, %v186
    %v195 = vmul.f32 %v187, %v187
    %v196 = vmul.f32 %v188, %v188
    %v197 = vmul.f32 %v189, %v189
    %v198 = vmul.f32 %v190, %v190
    %v199 = vmul.f32 %v191, %v191
    %v200 = vadd.f32 %v139, %v192
    %v201 = vadd.f32 %v140, %v193
    %v202 = vadd.f32 %v141, %v194
    %v203 = vadd.f32 %v142, %v195
    %v204 = vadd.f32 %v143, %v196
    %v205 = vadd.f32 %v144, %v197
    %v206 = vadd.f32 %v145, %v198
    %v207 = vadd.f32 %v146, %v199
    %v208 = vmin.f32 %v200, %v204
    %v209 = vmin.f32 %v201, %v205
    %v210 = vmin.f32 %v202, %v206
    %v211 = vmin.f32 %v203, %v207
    %v212 = vmin.f32 %v208, %v209
    %v213 = vmin.f32 %v210, %v211
    %v214 = vmin.f32 %v212, %v213
    %v215 = vrot.slane %v214, 4
    %v216 = vmin.f32 %v214, %v215
    %v217 = vrot.slane %v216, 2
    %v218 = vmin.f32 %v216, %v217
    %v219 = vrot.slane %v218, 1
    %v220 = vmin.f32 %v218, %v219
    %v221 = vld [vmem:[#allocation2] sm:$0x1]
    %v222 = vmin.f32 %v221, %v220
    %223 = vst [vmem:[#allocation2] sm:$0x1] %v222
    // Predicated region
    $region14: #{tpu_custom_call.1} parent=1 // pred_check
      %p224 = pneg %p12
    $region15: #{tpu_custom_call.1} parent=1 // pred_check_branch
      %226 = sbr.rel (%p224) target = $region17
    $region16: #{tpu_custom_call.1} parent=1 // pred_region
      %v227 = vld [vmem:[#allocation2] sm:$0x1]
      %v228 = vrsqrt.pop %v227
      %v229 = vmul.f32 %v227, %v228
      %vm230 = vcmp.eq.f32.partialorder %v227, inf
      %v231 = vsel %vm230, %v227, %v229
      %vm232 = vcmp.eq.f32.partialorder %v227, 0.0
      %v233 = vand.u32 %v227, 2147483648
      %v234 = vsel %vm232, %v233, %v231
      %v235 = vmul.f32 %v234, 2.0
      %v236 = vmin.f32 %v235, 0.25
      %v237 = vmul.f32 %v236, 4.0
      %v238 = vsub.f32 1.0, %v237
      %v239 = vmax.f32 %v238, 0.0
      %240 = vst [vmem:[#allocation2] sm:$0x1] %v239
    $region17: #{tpu_custom_call.1} parent=1 // pred_fallthru
      _
    // Predicated region
    $region18: #{tpu_custom_call.1} parent=1 // pred_check
      _
    $region19: #{tpu_custom_call.1} parent=1 // pred_check_branch
      %242 = sbr.rel (0) target = $region21
    $region20: #{tpu_custom_call.1} parent=1 // pred_region
      %s244 = ssub.s32 16, 16
      %245 = vsyncadd [#allocation3], %s244
      %s247 = sshll.u32 [#allocation2], 4
      %s248 = int_to_ptr.vmem [resolvable:$true] %s247
      %250 = dma.vmem_to_hbm [thread:$0]  %s248, 16, %s2, [#allocation3]
    $region21: #{tpu_custom_call.1} parent=1 // pred_fallthru
      _
    // Predicated region
    $region22: #{tpu_custom_call.1} parent=1 // pred_check
      _
    $region23: #{tpu_custom_call.1} parent=1 // pred_check_branch
      %252 = sbr.rel (0) target = $region25
    $region24: #{tpu_custom_call.1} parent=1 // pred_region
      %253 = dma.done [#allocation3], 16
    $region25: #{tpu_custom_call.1} parent=1 // pred_fallthru
      _
    %254 = vsyncpa [#allocation3], 1

</llo_original>
